<compile_context>
chip_gen: v7x
topology: tpu7x:2x2x1
jax: 0.10.0
libtpu: 0.0.40
codegen_flags: <defaults>
</compile_context>

<pallas_src>
import jax
import jax.numpy as jnp
from jax.experimental import pallas as pl
from jax.experimental.pallas import tpu as pltpu

KERNEL_SIZE = 5
BN_EPS = 1e-5


def conv_bn_relu_kernel(x_ref, w_ref, b_ref, o_ref):
    # x_ref: (TB, L, C_in)        channels-last block of TB batch elements (unpadded)
    # w_ref: (K*C_in, C_pad)      BN-folded conv weight, lanes padded to a multiple of 128
    # b_ref: (1, C_pad)           folded bias (conv bias + BN affine)
    # o_ref: (TB, L, C_pad)
    tb, L, c_in = x_ref.shape
    c_pad = o_ref.shape[-1]
    pad = KERNEL_SIZE // 2

    x = x_ref[...].astype(jnp.float32)                      # (TB, L, C_in)
    halo = jnp.zeros((tb, pad, c_in), jnp.float32)
    xp = jnp.concatenate([halo, x, halo], axis=1)           # (TB, L+2*pad, C_in), halo zeroed in VMEM

    # im2col window: columns ordered (k, c) to match w_ref's (K*C_in) row order.
    win = jnp.concatenate(
        [xp[:, k:k + L, :] for k in range(KERNEL_SIZE)], axis=-1
    )                                                       # (TB, L, K*C_in)
    win2d = win.reshape(tb * L, KERNEL_SIZE * c_in)         # (TB*L, K*C_in)

    # Single MXU matmul (BN already folded into w/b); f32 accumulation.
    y = jnp.dot(win2d, w_ref[...], preferred_element_type=jnp.float32)  # (TB*L, C_pad)
    y = jnp.maximum(y + b_ref[...], 0.0)                    # bias + ReLU
    # TODO(synk): Dropout(p=0.5) is identity in eval mode; training-mode random mask omitted.
    o_ref[...] = y.reshape(tb, L, c_pad).astype(o_ref.dtype)


def conv1d_bn_relu_dropout(x, w, b, gamma, beta, mean, var,
                           *, target_rows=1024, vmem_budget_bytes=12 * 1024 * 1024):
    """x: (N, C_in, L) f32; w: (K, C_in, C_out); b/gamma/beta/mean/var: (1, C_out).
    Returns (N, C_out, L), matching the PyTorch module's output layout."""
    N, C_in, L = x.shape
    K, _, C_out = w.shape
    assert K == KERNEL_SIZE

    # Lane-dense output channel count (multiple of 128).
    C_pad = ((C_out + 127) // 128) * 128

    # Fold BatchNorm (eval mode) + conv bias into the weights, in f32 on the host.
    scale = (gamma.reshape(1, C_out).astype(jnp.float32)
             * jax.lax.rsqrt(var.reshape(1, C_out).astype(jnp.float32) + BN_EPS))  # (1, C_out)
    w_eff = w.astype(jnp.float32) * scale.reshape(1, 1, C_out)                      # (K, C_in, C_out)
    b_eff = ((b.reshape(1, C_out).astype(jnp.float32) - mean.reshape(1, C_out)) * scale
             + beta.reshape(1, C_out))                                              # (1, C_out)

    # Flatten taps to a single contraction axis and pad lanes to C_pad.
    w2d = jnp.pad(w_eff.reshape(K * C_in, C_out), ((0, 0), (0, C_pad - C_out)))
    b2d = jnp.pad(b_eff, ((0, 0), (0, C_pad - C_out)))

    # Channels-last input for the kernel (no host-side halo pad — zeroed in VMEM).
    x_nlc = jnp.transpose(x, (0, 2, 1))                     # (N, L, C_in)

    # Batch-block size: fill the MXU M dimension (~target_rows rows per step) while keeping the
    # double-buffered in/out blocks PLUS in-kernel intermediates (halo copy, im2col window,
    # f32 matmul result) within a conservative VMEM budget (safe for v7x's 64 MiB VMEM).
    pad_rows = 2 * (KERNEL_SIZE // 2)
    per_batch_bytes = 4 * (
        2 * L * C_in                 # double-buffered input block
        + 2 * L * C_pad              # double-buffered output block
        + (L + pad_rows) * C_in      # halo-padded copy
        + L * KERNEL_SIZE * C_in     # im2col window
        + L * C_pad                  # f32 result before store
    )
    tb = max(1, min(N,
                    (target_rows + L - 1) // L,
                    max(1, vmem_budget_bytes // per_batch_bytes)))
    grid = (pl.cdiv(N, tb),)

    out_nlc = pl.pallas_call(
        conv_bn_relu_kernel,
        out_shape=jax.ShapeDtypeStruct((N, L, C_pad), x.dtype),
        grid_spec=pltpu.PrefetchScalarGridSpec(
            num_scalar_prefetch=0,
            grid=grid,
            in_specs=[
                pl.BlockSpec((tb, L, C_in), lambda n: (n, 0, 0)),        # batch block of input
                pl.BlockSpec((K * C_in, C_pad), lambda n: (0, 0)),       # folded weight (resident)
                pl.BlockSpec((1, C_pad), lambda n: (0, 0)),              # folded bias (resident)
            ],
            out_specs=pl.BlockSpec((tb, L, C_pad), lambda n: (n, 0, 0)),
        ),
        compiler_params=pltpu.CompilerParams(
            dimension_semantics=("parallel",),  # independent batch blocks -> shards across TCs
        ),
    )(x_nlc, w2d, b2d)

    # Slice off the lane padding and return in PyTorch NCW layout (fuses into one XLA copy).
    return jnp.transpose(out_nlc[:, :, :C_out], (0, 2, 1))


if __name__ == "__main__":
    # Small shapes consistent with the module: batch=2, input_dim=4, seq_len=16, hidden_dims=32
    N, C_in, L, C_out, K = 2, 4, 16, 32, KERNEL_SIZE

    key = jax.random.PRNGKey(0)
    ks = jax.random.split(key, 7)
    x = jax.random.normal(ks[0], (N, C_in, L), jnp.float32)

    # PyTorch Conv1d weight is (C_out, C_in, K); keep that for the reference,
    # and feed the kernel a (K, C_in, C_out) transposed copy.
    w_torch = jax.random.normal(ks[1], (C_out, C_in, K), jnp.float32) * 0.1
    w = jnp.transpose(w_torch, (2, 1, 0))
    b = (jax.random.normal(ks[2], (C_out,), jnp.float32) * 0.1).reshape(1, C_out)
    gamma = (1.0 + 0.1 * jax.random.normal(ks[3], (C_out,), jnp.float32)).reshape(1, C_out)
    beta = (0.1 * jax.random.normal(ks[4], (C_out,), jnp.float32)).reshape(1, C_out)
    mean = (0.1 * jax.random.normal(ks[5], (C_out,), jnp.float32)).reshape(1, C_out)
    var = (jnp.abs(jax.random.normal(ks[6], (C_out,), jnp.float32)) + 0.5).reshape(1, C_out)

    out = conv1d_bn_relu_dropout(x, w, b, gamma, beta, mean, var)
    out = jax.block_until_ready(out)

    # Pure-JAX reference (same eval-mode semantics, unfolded params) for a sanity check.
    y_ref = jax.lax.conv_general_dilated(
        x, w_torch, window_strides=(1,), padding=[(K // 2, K // 2)],
        dimension_numbers=("NCH", "OIH", "NCH"))
    y_ref = y_ref + b.reshape(1, C_out, 1)
    y_ref = (y_ref - mean.reshape(1, C_out, 1)) * jax.lax.rsqrt(var.reshape(1, C_out, 1) + BN_EPS)
    y_ref = y_ref * gamma.reshape(1, C_out, 1) + beta.reshape(1, C_out, 1)
    y_ref = jnp.maximum(y_ref, 0.0)

    assert out.shape == (N, C_out, L), out.shape
    err = float(jnp.max(jnp.abs(out - y_ref)))
    assert jnp.allclose(out, y_ref, atol=1e-4, rtol=1e-3), err
    print("KERNEL_OK")
</pallas_src>

<mosaic_0001>
module attributes {stable_mosaic.version = 11 : i64} {
  func.func @conv_bn_relu_kernel(%arg0: i32, %arg1: memref<2x16x4xf32, #tpu.memory_space<vmem>>, %arg2: memref<20x128xf32, #tpu.memory_space<vmem>>, %arg3: memref<1x128xf32, #tpu.memory_space<vmem>>, %arg4: memref<2x16x128xf32, #tpu.memory_space<vmem>>) attributes {dimension_semantics = [#tpu.dimension_semantics<parallel>], iteration_bounds = array<i64: 1>, scalar_prefetch = 0 : i64, scratch_operands = 0 : i64, tpu.core_type = #tpu.core_type<tc>, window_params = [{transform_indices = @transform_0, window_bounds = array<i64: 2, 16, 4>}, {pipeline_mode = #tpu.pipeline_mode<synchronous>, transform_indices = @transform_1, window_bounds = array<i64: 20, 128>}, {pipeline_mode = #tpu.pipeline_mode<synchronous>, transform_indices = @transform_2, window_bounds = array<i64: 1, 128>}, {transform_indices = @transform_3, window_bounds = array<i64: 2, 16, 128>}]} {
    %c0 = arith.constant 0 : index
    %c0_0 = arith.constant 0 : index
    %c0_1 = arith.constant 0 : index
    %0 = vector.load %arg1[%c0, %c0_0, %c0_1] : memref<2x16x4xf32, #tpu.memory_space<vmem>>, vector<2x16x4xf32>
    %cst = arith.constant 0.000000e+00 : f32
    %1 = vector.broadcast %cst : f32 to vector<2x2x4xf32>
    %2 = tpu.concatenate %1, %0, %1 in 1 : vector<2x2x4xf32>, vector<2x16x4xf32>, vector<2x2x4xf32> -> vector<2x20x4xf32>
    %3 = vector.extract_strided_slice %2 {offsets = [0, 0, 0], sizes = [2, 16, 4], strides = [1, 1, 1]} : vector<2x20x4xf32> to vector<2x16x4xf32>
    %4 = vector.extract_strided_slice %2 {offsets = [0, 1, 0], sizes = [2, 16, 4], strides = [1, 1, 1]} : vector<2x20x4xf32> to vector<2x16x4xf32>
    %5 = vector.extract_strided_slice %2 {offsets = [0, 2, 0], sizes = [2, 16, 4], strides = [1, 1, 1]} : vector<2x20x4xf32> to vector<2x16x4xf32>
    %6 = vector.extract_strided_slice %2 {offsets = [0, 3, 0], sizes = [2, 16, 4], strides = [1, 1, 1]} : vector<2x20x4xf32> to vector<2x16x4xf32>
    %7 = vector.extract_strided_slice %2 {offsets = [0, 4, 0], sizes = [2, 16, 4], strides = [1, 1, 1]} : vector<2x20x4xf32> to vector<2x16x4xf32>
    %8 = tpu.concatenate %3, %4, %5, %6, %7 in 2 : vector<2x16x4xf32>, vector<2x16x4xf32>, vector<2x16x4xf32>, vector<2x16x4xf32>, vector<2x16x4xf32> -> vector<2x16x20xf32>
    %9 = vector.shape_cast %8 : vector<2x16x20xf32> to vector<32x20xf32>
    %c0_2 = arith.constant 0 : index
    %c0_3 = arith.constant 0 : index
    %10 = vector.load %arg2[%c0_2, %c0_3] : memref<20x128xf32, #tpu.memory_space<vmem>>, vector<20x128xf32>
    %cst_4 = arith.constant dense<0.000000e+00> : vector<32x128xf32>
    %11 = tpu.matmul %9, %10, %cst_4 {dimension_numbers = #tpu.dot_dimension_numbers<[1], [0], [0], [1], [0, 0, 1, 1], [], []>} : vector<32x20xf32>, vector<20x128xf32>, vector<32x128xf32> -> vector<32x128xf32>
    %c0_5 = arith.constant 0 : index
    %c0_6 = arith.constant 0 : index
    %12 = vector.load %arg3[%c0_5, %c0_6] : memref<1x128xf32, #tpu.memory_space<vmem>>, vector<1x128xf32>
    %13 = vector.broadcast %12 : vector<1x128xf32> to vector<32x128xf32>
    %14 = arith.addf %11, %13 : vector<32x128xf32>
    %cst_7 = arith.constant 0.000000e+00 : f32
    %15 = vector.broadcast %cst_7 : f32 to vector<32x128xf32>
    %16 = arith.maximumf %14, %15 : vector<32x128xf32>
    %17 = vector.shape_cast %16 : vector<32x128xf32> to vector<2x16x128xf32>
    %c0_8 = arith.constant 0 : index
    %c0_9 = arith.constant 0 : index
    %c0_10 = arith.constant 0 : index
    %18 = vector.load %arg4[%c0_8, %c0_9, %c0_10] : memref<2x16x128xf32, #tpu.memory_space<vmem>>, vector<2x16x128xf32>
    tpu.vector_store %arg4[%c0_8, %c0_9, %c0_10], %17 {strides = array<i32>} : memref<2x16x128xf32, #tpu.memory_space<vmem>>, vector<2x16x128xf32>,
    return
  }
  func.func @transform_0(%arg0: i32) -> (i32, i32, i32) {
    %c0_i32 = arith.constant 0 : i32
    %c0_i32_0 = arith.constant 0 : i32
    %c0_i32_1 = arith.constant 0 : i32
    return %arg0, %c0_i32, %c0_i32_0 : i32, i32, i32
  }
  func.func @transform_1(%arg0: i32) -> (i32, i32) {
    %c0_i32 = arith.constant 0 : i32
    %c0_i32_0 = arith.constant 0 : i32
    %c0_i32_1 = arith.constant 0 : i32
    return %c0_i32, %c0_i32_0 : i32, i32
  }
  func.func @transform_2(%arg0: i32) -> (i32, i32) {
    %c0_i32 = arith.constant 0 : i32
    %c0_i32_0 = arith.constant 0 : i32
    %c0_i32_1 = arith.constant 0 : i32
    return %c0_i32, %c0_i32_0 : i32, i32
  }
  func.func @transform_3(%arg0: i32) -> (i32, i32, i32) {
    %c0_i32 = arith.constant 0 : i32
    %c0_i32_0 = arith.constant 0 : i32
    %c0_i32_1 = arith.constant 0 : i32
    return %arg0, %c0_i32, %c0_i32_0 : i32, i32, i32
  }
}

</mosaic_0001>

<llo_original>
// kernel: tpu_custom_call.1
$region0: #{tpu_custom_call.1}
  #allocation0 [shape = 'u32[]', space=smem, size = 0x4, offset = 0x4, fixed_abs, tag = 'smem constant byte address 0x4 - core index']
  #allocation1 [shape = 'u32[144,128]{1,0:T(1,128)}', space=vmem, size = 0x12000, scoped, tag = 'internal scratch']
  %s0 = inlined_call_operand.vmem [shape: f32[2,16,4], index: 0, kind: input, shape index: {}]
  %s1 = inlined_call_operand.vmem [shape: f32[20,128], index: 1, kind: input, shape index: {}]
  %s2 = inlined_call_operand.vmem [shape: f32[1,128], index: 2, kind: input, shape index: {}]
  %s3 = inlined_call_operand.hbm [shape: f32[2,16,128], index: 3, kind: output, shape index: {}]
  %s4 = sld [smem:[#allocation0]]
  $region22: #{tpu_custom_call.1} parent=0
    _
  %s6 = ssub.s32 1, %s4
  %s7 = scalar_select 0, %s6, %s4
  $region1: #{tpu_custom_call.1} parent=0
    #allocation2 [shape = 'u8[16384]{0}', space=vmem, size = 0x4000, scoped, tag = 'output window, operand 0, single buffered']
    #allocation3 [shape = 's32[1]{0}', space=sflag, size = 0x4, scoped, tag = 'scoped memory for tpu_custom_call.1']
    %8 = vsyncpa [#allocation3], 0
    // Predicated region
    $region2: #{tpu_custom_call.1} parent=1 // pred_check
      _
    $region3: #{tpu_custom_call.1} parent=1 // pred_check_branch
      %10 = sbr.rel (0) target = $region5
    $region4: #{tpu_custom_call.1} parent=1 // pred_region
      _
    $region5: #{tpu_custom_call.1} parent=1 // pred_fallthru
      _
    // Predicated region
    $region6: #{tpu_custom_call.1} parent=1 // pred_check
      _
    $region7: #{tpu_custom_call.1} parent=1 // pred_check_branch
      %12 = sbr.rel (0) target = $region9
    $region8: #{tpu_custom_call.1} parent=1 // pred_region
      _
    $region9: #{tpu_custom_call.1} parent=1 // pred_fallthru
      _
    // Predicated region
    $region10: #{tpu_custom_call.1} parent=1 // pred_check
      _
    $region11: #{tpu_custom_call.1} parent=1 // pred_check_branch
      %14 = sbr.rel (0) target = $region13
    $region12: #{tpu_custom_call.1} parent=1 // pred_region
      _
    $region13: #{tpu_custom_call.1} parent=1 // pred_fallthru
      _
    %v15 = vld [vmem:[%s0] sm:$0xff]
    %v16 = vld [vmem:[%s0 + $0x8] sm:$0xff]
    %v17 = vld [vmem:[%s0 + $0x10] sm:$0xff]
    %v18 = vld [vmem:[%s0 + $0x18] sm:$0xff]
    %vm23 = vcmask 1041408
    %v24 = vrot.slane %v15, 6
    %v25 = vrot.slane %v16, 6
    %v26 = vsel %vm23, %v24, %v25
    %v27 = vrot.slane %v17, 6
    %v28 = vrot.slane %v18, 6
    %v29 = vsel %vm23, %v27, %v28
    %v36 = vsel %vm23, 0.0, %v24
    %v37 = vsel %vm23, 0.0, %v27
    %v38 = vsel %vm23, %v25, 0.0
    %v39 = vsel %vm23, %v28, 0.0
    %vm44 = vcmask 1046528
    %v45 = vrot.slane %v36, 1
    %v46 = vrot.slane %v26, 1
    %v47 = vsel %vm44, %v45, %v46
    %v48 = vrot.slane %v38, 1
    %v49 = vsel %vm44, %v46, %v48
    %v50 = vrot.slane %v37, 1
    %v51 = vrot.slane %v29, 1
    %v52 = vsel %vm44, %v50, %v51
    %v53 = vrot.slane %v39, 1
    %v54 = vsel %vm44, %v51, %v53
    %55 = vrot.lane.b32.xlu0 %v47, 4
    %v56 = vpop.permute.xlu0 %55
    %57 = vrot.lane.b32.xlu0 %v49, 4
    %v58 = vpop.permute.xlu0 %57
    %59 = vrot.lane.b32.xlu0 %v52, 4
    %v60 = vpop.permute.xlu0 %59
    %61 = vrot.lane.b32.xlu0 %v54, 4
    %v62 = vpop.permute.xlu0 %61
    %vm67 = vcmask 1045504
    %v68 = vrot.slane %v36, 2
    %v69 = vrot.slane %v26, 2
    %v70 = vsel %vm67, %v68, %v69
    %v71 = vrot.slane %v38, 2
    %v72 = vsel %vm67, %v69, %v71
    %v73 = vrot.slane %v37, 2
    %v74 = vrot.slane %v29, 2
    %v75 = vsel %vm67, %v73, %v74
    %v76 = vrot.slane %v39, 2
    %v77 = vsel %vm67, %v74, %v76
    %78 = vrot.lane.b32.xlu0 %v70, 8
    %v79 = vpop.permute.xlu0 %78
    %80 = vrot.lane.b32.xlu0 %v72, 8
    %v81 = vpop.permute.xlu0 %80
    %82 = vrot.lane.b32.xlu0 %v75, 8
    %v83 = vpop.permute.xlu0 %82
    %84 = vrot.lane.b32.xlu0 %v77, 8
    %v85 = vpop.permute.xlu0 %84
    %vm90 = vcmask 1044480
    %v91 = vrot.slane %v36, 3
    %v92 = vrot.slane %v26, 3
    %v93 = vsel %vm90, %v91, %v92
    %v94 = vrot.slane %v38, 3
    %v95 = vsel %vm90, %v92, %v94
    %v96 = vrot.slane %v37, 3
    %v97 = vrot.slane %v29, 3
    %v98 = vsel %vm90, %v96, %v97
    %v99 = vrot.slane %v39, 3
    %v100 = vsel %vm90, %v97, %v99
    %101 = vrot.lane.b32.xlu0 %v93, 12
    %v102 = vpop.permute.xlu0 %101
    %103 = vrot.lane.b32.xlu0 %v95, 12
    %v104 = vpop.permute.xlu0 %103
    %105 = vrot.lane.b32.xlu0 %v98, 12
    %v106 = vpop.permute.xlu0 %105
    %107 = vrot.lane.b32.xlu0 %v100, 12
    %v108 = vpop.permute.xlu0 %107
    %vm113 = vcmask 1043456
    %v114 = vrot.slane %v36, 4
    %v115 = vrot.slane %v26, 4
    %v116 = vsel %vm113, %v114, %v115
    %v117 = vrot.slane %v38, 4
    %v118 = vsel %vm113, %v115, %v117
    %v119 = vrot.slane %v37, 4
    %v120 = vrot.slane %v29, 4
    %v121 = vsel %vm113, %v119, %v120
    %v122 = vrot.slane %v39, 4
    %v123 = vsel %vm113, %v120, %v122
    %124 = vrot.lane.b32.xlu0 %v116, 16
    %v125 = vpop.permute.xlu0 %124
    %126 = vrot.lane.b32.xlu0 %v118, 16
    %v127 = vpop.permute.xlu0 %126
    %128 = vrot.lane.b32.xlu0 %v121, 16
    %v129 = vpop.permute.xlu0 %128
    %130 = vrot.lane.b32.xlu0 %v123, 16
    %v131 = vpop.permute.xlu0 %130
    %vm136 = vcmask 31744
    %v137 = vsel %vm136, %v36, %v56
    %v138 = vsel %vm136, %v26, %v58
    %v139 = vsel %vm136, %v37, %v60
    %v140 = vsel %vm136, %v29, %v62
    %vm141 = vcmask 64512
    %v142 = vsel %vm141, %v137, %v79
    %v143 = vsel %vm141, %v138, %v81
    %v144 = vsel %vm141, %v139, %v83
    %v145 = vsel %vm141, %v140, %v85
    %vm146 = vcmask 97280
    %v147 = vsel %vm146, %v142, %v102
    %v148 = vsel %vm146, %v143, %v104
    %v149 = vsel %vm146, %v144, %v106
    %v150 = vsel %vm146, %v145, %v108
    %vm151 = vcmask 130048
    %v152 = vsel %vm151, %v147, %v125
    %v153 = vsel %vm151, %v148, %v127
    %v154 = vsel %vm151, %v149, %v129
    %v155 = vsel %vm151, %v150, %v131
    %v156 = vld [vmem:[%s1] sm:$0xff]
    %v157 = vld [vmem:[%s1 + $0x8] sm:$0xff]
    %v158 = vld [vmem:[%s1 + $0x10] sm:$0xf]
    %v159 = vld [vmem:[%s2] sm:$0x1]
    %v161 = vlaneseq
    %v162 = vshrl.u32 %v161, 7
    %v163 = vsub.s32 0, %v162
    %v164 = vrot.slane %v159, %v163
    %vm166 = vcmask 162816
    %v168 = vsel %vm166, %v152, 0
    %v171 = vsel %vm166, %v153, 0
    %v174 = vsel %vm166, %v154, 0
    %v177 = vsel %vm166, %v155, 0
    %v180 = vsel %vm113, %v158, 0
    %182 = vmatprep.subr.mxu0 0.0
    %183 = vmatpush1.msra.mxu0 %v156
    %184 = vmatprep.subr.mxu0 0.0
    %185 = vmatpush1.msra.mxu0 %v157
    %186 = vmatprep.subr.mxu0 0.0
    %187 = vmatpush1.msra.mxu0 %v180
    %188 = vmatprep.subr.mxu0 0.0
    %189 = vmatpush1.msra.mxu0 0.0
    %190 = vmatprep.subr.mxu0 0.0
    %191 = vmatpush1.msra.mxu0 0.0
    %192 = vmatprep.subr.mxu0 0.0
    %193 = vmatpush1.msra.mxu0 0.0
    %194 = vmatprep.subr.mxu0 0.0
    %195 = vmatpush1.msra.mxu0 0.0
    %196 = vmatprep.subr.mxu0 0.0
    %197 = vmatpush1.msra.mxu0 0.0
    %198 = vmatprep.subr.mxu0 0.0
    %199 = vmatpush1.msra.mxu0 0.0
    %200 = vmatprep.subr.mxu0 0.0
    %201 = vmatpush1.msra.mxu0 0.0
    %202 = vmatprep.subr.mxu0 0.0
    %203 = vmatpush1.msra.mxu0 0.0
    %204 = vmatprep.subr.mxu0 0.0
    %205 = vmatpush1.msra.mxu0 0.0
    %206 = vmatprep.subr.mxu0 0.0
    %207 = vmatpush1.msra.mxu0 0.0
    %208 = vmatprep.subr.mxu0 0.0
    %209 = vmatpush1.msra.mxu0 0.0
    %210 = vmatprep.subr.mxu0 0.0
    %211 = vmatpush1.msra.mxu0 0.0
    %212 = vmatprep.subr.mxu0 0.0
    %213 = vmatpush1.msra.mxu0 0.0
    %214 = vmatprep.subr.mxu0 0.0
    %215 = vmatpush1.msra.mxu0 0.0
    %216 = vmatprep.subr.mxu0 0.0
    %217 = vmatpush1.msra.mxu0 0.0
    %218 = vmatprep.subr.mxu0 0.0
    %219 = vmatpush1.msra.mxu0 0.0
    %220 = vmatprep.subr.mxu0 0.0
    %221 = vmatpush1.msra.mxu0 0.0
    %222 = vmatprep.subr.mxu0 0.0
    %223 = vmatpush1.msra.mxu0 0.0
    %224 = vmatprep.subr.mxu0 0.0
    %225 = vmatpush1.msra.mxu0 0.0
    %226 = vmatprep.subr.mxu0 0.0
    %227 = vmatpush1.msra.mxu0 0.0
    %228 = vmatprep.subr.mxu0 0.0
    %229 = vmatpush1.msra.mxu0 0.0
    %230 = vmatprep.subr.mxu0 0.0
    %231 = vmatpush1.msra.mxu0 0.0
    %232 = vmatprep.subr.mxu0 0.0
    %233 = vmatpush1.msra.mxu0 0.0
    %234 = vmatprep.subr.mxu0 0.0
    %235 = vmatpush1.msra.mxu0 0.0
    %236 = vmatprep.subr.mxu0 0.0
    %237 = vmatpush1.msra.mxu0 0.0
    %238 = vmatprep.subr.mxu0 0.0
    %239 = vmatpush1.msra.mxu0 0.0
    %240 = vmatprep.subr.mxu0 0.0
    %241 = vmatpush1.msra.mxu0 0.0
    %242 = vmatprep.subr.mxu0 0.0
    %243 = vmatpush1.msra.mxu0 0.0
    %244 = vmatprep.subr.mxu0 0.0
    %245 = vmatpush1.msra.mxu0 0.0
    %246 = vmatprep.mubr.f32.mxu0 0.0
    %247 = vmatmul.mubr.f32.gmra.mrb[0].mxu0 %v168
    %v248 = vpop.f32.mrb[0].mxu0
    %v249 = vadd.f32 %v164, %v248
    %v250 = vpop.f32.mrb[0].mxu0
    %251 = vmatprep.mubr.f32.mxu0 0.0
    %252 = vmatmul.mubr.f32.gmra.mrb[0].mxu0 %v171
    %v253 = vpop.f32.mrb[0].mxu0
    %v254 = vadd.f32 %v164, %v253
    %v255 = vpop.f32.mrb[0].mxu0
    %256 = vmatprep.mubr.f32.mxu0 0.0
    %257 = vmatmul.mubr.f32.gmra.mrb[0].mxu0 %v174
    %v258 = vpop.f32.mrb[0].mxu0
    %v259 = vadd.f32 %v164, %v258
    %v260 = vpop.f32.mrb[0].mxu0
    %261 = vmatprep.mubr.f32.mxu0 0.0
    %262 = vmatmul.mubr.f32.gmra.mrb[0].mxu0 %v177
    %v263 = vpop.f32.mrb[0].mxu0
    %v264 = vadd.f32 %v164, %v263
    %v265 = vpop.f32.mrb[0].mxu0
    %266 = vdwg.mxu0
    %v267 = vmax.f32 %v249, 0.0
    %v268 = vmax.f32 %v254, 0.0
    %v269 = vmax.f32 %v259, 0.0
    %v270 = vmax.f32 %v264, 0.0
    %271 = vst [vmem:[#allocation2] sm:$0xff] %v267
    %272 = vst [vmem:[#allocation2 + $0x8] sm:$0xff] %v268
    %273 = vst [vmem:[#allocation2 + $0x10] sm:$0xff] %v269
    %274 = vst [vmem:[#allocation2 + $0x18] sm:$0xff] %v270
    // Predicated region
    $region14: #{tpu_custom_call.1} parent=1 // pred_check
      _
    $region15: #{tpu_custom_call.1} parent=1 // pred_check_branch
      %276 = sbr.rel (0) target = $region17
    $region16: #{tpu_custom_call.1} parent=1 // pred_region
      %s278 = ssub.s32 512, 512
      %279 = vsyncadd [#allocation3], %s278
      %s280 = sshll.u32 [#allocation2], 4
      %s281 = int_to_ptr.vmem [resolvable:$true] %s280
      %286 = dma.vmem_to_hbm [thread:$0]  %s281, 512, %s3, [#allocation3], 128, 128, 8
    $region17: #{tpu_custom_call.1} parent=1 // pred_fallthru
      _
    // Predicated region
    $region18: #{tpu_custom_call.1} parent=1 // pred_check
      _
    $region19: #{tpu_custom_call.1} parent=1 // pred_check_branch
      %288 = sbr.rel (0) target = $region21
    $region20: #{tpu_custom_call.1} parent=1 // pred_region
      %289 = dma.done [#allocation3], 512
    $region21: #{tpu_custom_call.1} parent=1 // pred_fallthru
      _
    %290 = vsyncpa [#allocation3], 1

</llo_original>
